<compile_context>
chip_gen: v7x
topology: tpu7x:2x2x1
jax: 0.10.0
libtpu: 0.0.40
codegen_flags: <defaults>
</compile_context>

<pallas_src>
import jax
import jax.numpy as jnp
from jax.experimental import pallas as pl
from jax.experimental.pallas import tpu as pltpu


def _bayes_linear_kernel(x_ref, eps_w_ref, w_s_ref, w_mu_ref,
                         eps_b_ref, b_s_ref, b_mu_ref, out_ref, acc_ref):
    # x_ref:     (TB, TI)      inputs for TB samples, one reduction slab of I
    # eps_w_ref: (TB, TO, TI)  per-sample weight noise (streamed; dominates HBM traffic)
    # w_s_ref:   (TO, TI)      exp(weight_psi), precomputed in the wrapper
    # w_mu_ref:  (TO, TI)      weight mean
    # eps_b_ref: (TB, TO)      per-sample bias noise
    # b_s_ref:   (1, TO)       exp(bias_psi)
    # b_mu_ref:  (1, TO)       bias mean
    # out_ref:   (TB, TO)
    # acc_ref:   (TB, TO) f32  partial-sum accumulator across the reduction axis
    k = pl.program_id(2)

    @pl.when(k == 0)
    def _():
        acc_ref[...] = jnp.zeros_like(acc_ref)

    x = x_ref[...]                                              # (TB, TI)

    # Mean contribution: dense MXU matmul  x @ weight_mu.T -> (TB, TO).
    mu_out = jax.lax.dot_general(
        x, w_mu_ref[...],
        dimension_numbers=(((1,), (1,)), ((), ())),
        preferred_element_type=jnp.float32)

    # Noise contribution: noise[b, o] += sum_i eps_w[b, o, i] * exp(psi)[o, i] * x[b, i].
    # Per-sample matvec (weights differ per sample) -> VPU multiply + lane (XLU) reduce.
    scaled = eps_w_ref[...] * w_s_ref[...][None, :, :]          # (TB, TO, TI)
    noise_out = jnp.sum(scaled * x[:, None, :], axis=-1)        # (TB, TO)

    acc_ref[...] += mu_out + noise_out

    @pl.when(k == pl.num_programs(2) - 1)
    def _():
        bias = eps_b_ref[...] * b_s_ref[...] + b_mu_ref[...]    # (TB, TO)
        out_ref[...] = (acc_ref[...] + bias).astype(out_ref.dtype)


# VMEM budgeting: keep tiles (with double-buffering) under ~28 MiB and allow the
# compiler up to 40 MiB of scoped VMEM -- safe on v5e/v6e (128 MiB) and v7x (64 MiB).
_VMEM_TILE_BUDGET = 28 * 1024 * 1024
_VMEM_LIMIT_BYTES = 40 * 1024 * 1024


def _lane_tile_candidates(n, m=128):
    """Candidates: n itself (always legal), plus multiple-of-m divisors of n, descending."""
    cands = [n]
    for t in range((n // m) * m, 0, -m):
        if t < n and n % t == 0:
            cands.append(t)
    return cands


def _choose_tiles(B, O, I, itemsize=4, budget=_VMEM_TILE_BUDGET):
    """Pick (TB, TO, TI) respecting the (8, 128) block rule and the VMEM budget."""
    if B <= 32:
        tb_cands = [B]
    else:
        tb_cands = [t for t in (32, 16, 8) if B % t == 0] or [B]
    to_cands = _lane_tile_candidates(O)
    ti_cands = _lane_tile_candidates(I)

    def footprint(tb, to, ti):
        eps_w = 2 * tb * to * ti * itemsize                     # streamed, double-buffered
        resid = 2 * (tb * ti + 2 * to * ti) * itemsize          # x + exp(psi) + mu
        small = 2 * (2 * tb * to + 2 * to) * itemsize           # eps_b, out, bias params
        acc = tb * to * itemsize                                # accumulator scratch
        return eps_w + resid + small + acc

    # Prefer large reduction slabs (fewer grid steps, bigger DMAs), then large
    # lane-dense output tiles, then the batch tile.
    for ti in ti_cands:
        for to in to_cands:
            for tb in tb_cands:
                if footprint(tb, to, ti) <= budget:
                    return tb, to, ti
    return tb_cands[-1], to_cands[-1], ti_cands[-1]   # smallest legal; rely on vmem limit


def bayes_linear_forward(x, eps_w, weight_psi, weight_mu, eps_b, bias_psi, bias_mu):
    """Stochastic BayesLinear forward pass. All args float32.

    x:          (B, I)
    eps_w:      (B, O, I)   per-sample weight noise (torch.randn equivalent)
    weight_psi: (O, I)
    weight_mu:  (O, I)
    eps_b:      (B, O)      per-sample bias noise
    bias_psi:   (O,) or (1, O)
    bias_mu:    (O,) or (1, O)
    returns:    (B, O)
    """
    B, I = x.shape
    O = weight_mu.shape[0]
    assert eps_w.shape == (B, O, I) and eps_b.shape == (B, O)

    # Hoist the exp() of the shared parameters out of the per-step kernel body:
    # O*I transcendentals once instead of B*O*I on the single EUP.
    w_s = jnp.exp(weight_psi)
    b_s = jnp.exp(bias_psi).reshape(1, O)
    b_mu = bias_mu.reshape(1, O)

    TB, TO, TI = _choose_tiles(B, O, I)
    grid = (B // TB, O // TO, I // TI)

    grid_spec = pltpu.PrefetchScalarGridSpec(
        num_scalar_prefetch=0,
        grid=grid,
        in_specs=[
            pl.BlockSpec((TB, TI), lambda b, o, k: (b, k)),          # x
            pl.BlockSpec((TB, TO, TI), lambda b, o, k: (b, o, k)),   # eps_w (streamed)
            pl.BlockSpec((TO, TI), lambda b, o, k: (o, k)),          # exp(weight_psi)
            pl.BlockSpec((TO, TI), lambda b, o, k: (o, k)),          # weight_mu
            pl.BlockSpec((TB, TO), lambda b, o, k: (b, o)),          # eps_b
            pl.BlockSpec((1, TO), lambda b, o, k: (0, o)),           # exp(bias_psi)
            pl.BlockSpec((1, TO), lambda b, o, k: (0, o)),           # bias_mu
        ],
        out_specs=pl.BlockSpec((TB, TO), lambda b, o, k: (b, o)),
        scratch_shapes=[pltpu.VMEM((TB, TO), jnp.float32)],
    )

    return pl.pallas_call(
        _bayes_linear_kernel,
        out_shape=jax.ShapeDtypeStruct((B, O), x.dtype),
        grid_spec=grid_spec,
        compiler_params=pltpu.CompilerParams(
            # (batch-tile, out-tile) blocks are independent -> parallel (megacore /
            # dual-TC sharding). The in_features contraction is the trailing
            # "arbitrary" reduction axis with the VMEM accumulator.
            dimension_semantics=("parallel", "parallel", "arbitrary"),
            vmem_limit_bytes=_VMEM_LIMIT_BYTES),
    )(x, eps_w, w_s, weight_mu, eps_b, b_s, b_mu)


if __name__ == "__main__":
    # Small shapes consistent with Linear(in_features=32, out_features=32), batch=2.
    B, IN, OUT = 2, 32, 32
    key = jax.random.PRNGKey(0)
    k_x, k_wmu, k_wpsi, k_bmu, k_bpsi, k_ew, k_eb = jax.random.split(key, 7)

    x = jax.random.normal(k_x, (B, IN), dtype=jnp.float32)

    # Deterministic synthetic parameter init (module __init__ only defines shapes).
    weight_mu = 0.1 * jax.random.normal(k_wmu, (OUT, IN), dtype=jnp.float32)
    weight_psi = -3.0 + 0.1 * jax.random.normal(k_wpsi, (OUT, IN), dtype=jnp.float32)
    bias_mu = 0.1 * jax.random.normal(k_bmu, (OUT,), dtype=jnp.float32)
    bias_psi = -3.0 + 0.1 * jax.random.normal(k_bpsi, (OUT,), dtype=jnp.float32)

    # Per-sample Gaussian noise (torch.randn equivalent, deterministic here).
    eps_w = jax.random.normal(k_ew, (B, OUT, IN), dtype=jnp.float32)
    eps_b = jax.random.normal(k_eb, (B, OUT), dtype=jnp.float32)

    out = bayes_linear_forward(x, eps_w, weight_psi, weight_mu,
                               eps_b, bias_psi, bias_mu)
    out = jax.block_until_ready(out)

    # Pure-JAX reference (mirrors the PyTorch forward exactly).
    w_ref = eps_w * jnp.exp(weight_psi)[None] + weight_mu[None]        # (B, O, I)
    ref = jnp.einsum("boi,bi->bo", w_ref, x)                           # bmm + squeeze
    ref = ref + (eps_b * jnp.exp(bias_psi)[None] + bias_mu[None])      # bias
    assert out.shape == (B, OUT)
    assert jnp.allclose(out, ref, atol=1e-4, rtol=1e-4), "mismatch vs reference"

    print("KERNEL_OK")
</pallas_src>

<mosaic_0001>
module attributes {stable_mosaic.version = 11 : i64} {
  func.func @_bayes_linear_kernel(%arg0: i32, %arg1: i32, %arg2: i32, %arg3: memref<2x32xf32, #tpu.memory_space<vmem>>, %arg4: memref<2x32x32xf32, #tpu.memory_space<vmem>>, %arg5: memref<32x32xf32, #tpu.memory_space<vmem>>, %arg6: memref<32x32xf32, #tpu.memory_space<vmem>>, %arg7: memref<2x32xf32, #tpu.memory_space<vmem>>, %arg8: memref<1x32xf32, #tpu.memory_space<vmem>>, %arg9: memref<1x32xf32, #tpu.memory_space<vmem>>, %arg10: memref<2x32xf32, #tpu.memory_space<vmem>>, %arg11: memref<2x32xf32, #tpu.memory_space<vmem>>) attributes {dimension_semantics = [#tpu.dimension_semantics<parallel>, #tpu.dimension_semantics<parallel>, #tpu.dimension_semantics<arbitrary>], iteration_bounds = array<i64: 1, 1, 1>, scalar_prefetch = 0 : i64, scratch_operands = 1 : i64, tpu.core_type = #tpu.core_type<tc>, window_params = [{transform_indices = @transform_0, window_bounds = array<i64: 2, 32>}, {transform_indices = @transform_1, window_bounds = array<i64: 2, 32, 32>}, {transform_indices = @transform_2, window_bounds = array<i64: 32, 32>}, {transform_indices = @transform_3, window_bounds = array<i64: 32, 32>}, {transform_indices = @transform_4, window_bounds = array<i64: 2, 32>}, {transform_indices = @transform_5, window_bounds = array<i64: 1, 32>}, {transform_indices = @transform_6, window_bounds = array<i64: 1, 32>}, {transform_indices = @transform_7, window_bounds = array<i64: 2, 32>}]} {
    %c0_i32 = arith.constant 0 : i32
    %0 = arith.cmpi eq, %arg2, %c0_i32 : i32
    %1 = arith.extui %0 : i1 to i32
    %c0_i32_0 = arith.constant 0 : i32
    %2 = arith.cmpi ne, %1, %c0_i32_0 : i32
    scf.if %2 {
      %cst_16 = arith.constant 0.000000e+00 : f32
      %22 = vector.broadcast %cst_16 : f32 to vector<2x32xf32>
      %c0_17 = arith.constant 0 : index
      %c0_18 = arith.constant 0 : index
      %23 = vector.load %arg11[%c0_17, %c0_18] : memref<2x32xf32, #tpu.memory_space<vmem>>, vector<2x32xf32>
      tpu.vector_store %arg11[%c0_17, %c0_18], %22 {strides = array<i32>} : memref<2x32xf32, #tpu.memory_space<vmem>>, vector<2x32xf32>,
    } else {
    }
    %c0 = arith.constant 0 : index
    %c0_1 = arith.constant 0 : index
    %3 = vector.load %arg3[%c0, %c0_1] : memref<2x32xf32, #tpu.memory_space<vmem>>, vector<2x32xf32>
    %c0_2 = arith.constant 0 : index
    %c0_3 = arith.constant 0 : index
    %4 = vector.load %arg6[%c0_2, %c0_3] : memref<32x32xf32, #tpu.memory_space<vmem>>, vector<32x32xf32>
    %cst = arith.constant dense<0.000000e+00> : vector<2x32xf32>
    %5 = tpu.matmul %3, %4, %cst {dimension_numbers = #tpu.dot_dimension_numbers<[1], [1], [0], [0], [0, 0, 1, 0], [], []>} : vector<2x32xf32>, vector<32x32xf32>, vector<2x32xf32> -> vector<2x32xf32>
    %c0_4 = arith.constant 0 : index
    %c0_5 = arith.constant 0 : index
    %c0_6 = arith.constant 0 : index
    %6 = vector.load %arg4[%c0_4, %c0_5, %c0_6] : memref<2x32x32xf32, #tpu.memory_space<vmem>>, vector<2x32x32xf32>
    %c0_7 = arith.constant 0 : index
    %c0_8 = arith.constant 0 : index
    %7 = vector.load %arg5[%c0_7, %c0_8] : memref<32x32xf32, #tpu.memory_space<vmem>>, vector<32x32xf32>
    %8 = vector.shape_cast %7 : vector<32x32xf32> to vector<1x32x32xf32>
    %9 = vector.broadcast %8 : vector<1x32x32xf32> to vector<2x32x32xf32>
    %10 = arith.mulf %6, %9 : vector<2x32x32xf32>
    %11 = vector.shape_cast %3 : vector<2x32xf32> to vector<2x1x32xf32>
    %12 = vector.broadcast %11 : vector<2x1x32xf32> to vector<2x32x32xf32>
    %13 = arith.mulf %10, %12 : vector<2x32x32xf32>
    %cst_9 = arith.constant dense<0.000000e+00> : vector<2x32xf32>
    %14 = vector.multi_reduction <add>, %13, %cst_9 [2] : vector<2x32x32xf32> to vector<2x32xf32>
    %c0_10 = arith.constant 0 : index
    %c0_11 = arith.constant 0 : index
    %15 = vector.load %arg11[%c0_10, %c0_11] : memref<2x32xf32, #tpu.memory_space<vmem>>, vector<2x32xf32>
    %16 = arith.addf %5, %14 : vector<2x32xf32>
    %17 = arith.addf %15, %16 : vector<2x32xf32>
    %c0_12 = arith.constant 0 : index
    %c0_13 = arith.constant 0 : index
    %18 = vector.load %arg11[%c0_12, %c0_13] : memref<2x32xf32, #tpu.memory_space<vmem>>, vector<2x32xf32>
    tpu.vector_store %arg11[%c0_12, %c0_13], %17 {strides = array<i32>} : memref<2x32xf32, #tpu.memory_space<vmem>>, vector<2x32xf32>,
    %c0_i32_14 = arith.constant 0 : i32
    %19 = arith.cmpi eq, %arg2, %c0_i32_14 : i32
    %20 = arith.extui %19 : i1 to i32
    %c0_i32_15 = arith.constant 0 : i32
    %21 = arith.cmpi ne, %20, %c0_i32_15 : i32
    scf.if %21 {
      %c0_16 = arith.constant 0 : index
      %c0_17 = arith.constant 0 : index
      %22 = vector.load %arg7[%c0_16, %c0_17] : memref<2x32xf32, #tpu.memory_space<vmem>>, vector<2x32xf32>
      %c0_18 = arith.constant 0 : index
      %c0_19 = arith.constant 0 : index
      %23 = vector.load %arg8[%c0_18, %c0_19] : memref<1x32xf32, #tpu.memory_space<vmem>>, vector<1x32xf32>
      %24 = vector.broadcast %23 : vector<1x32xf32> to vector<2x32xf32>
      %25 = arith.mulf %22, %24 : vector<2x32xf32>
      %c0_20 = arith.constant 0 : index
      %c0_21 = arith.constant 0 : index
      %26 = vector.load %arg9[%c0_20, %c0_21] : memref<1x32xf32, #tpu.memory_space<vmem>>, vector<1x32xf32>
      %27 = vector.broadcast %26 : vector<1x32xf32> to vector<2x32xf32>
      %28 = arith.addf %25, %27 : vector<2x32xf32>
      %c0_22 = arith.constant 0 : index
      %c0_23 = arith.constant 0 : index
      %29 = vector.load %arg11[%c0_22, %c0_23] : memref<2x32xf32, #tpu.memory_space<vmem>>, vector<2x32xf32>
      %30 = arith.addf %29, %28 : vector<2x32xf32>
      %c0_24 = arith.constant 0 : index
      %c0_25 = arith.constant 0 : index
      %31 = vector.load %arg10[%c0_24, %c0_25] : memref<2x32xf32, #tpu.memory_space<vmem>>, vector<2x32xf32>
      tpu.vector_store %arg10[%c0_24, %c0_25], %30 {strides = array<i32>} : memref<2x32xf32, #tpu.memory_space<vmem>>, vector<2x32xf32>,
    } else {
    }
    return
  }
  func.func @transform_0(%arg0: i32, %arg1: i32, %arg2: i32) -> (i32, i32) {
    %c0_i32 = arith.constant 0 : i32
    return %arg0, %arg2 : i32, i32
  }
  func.func @transform_1(%arg0: i32, %arg1: i32, %arg2: i32) -> (i32, i32, i32) {
    %c0_i32 = arith.constant 0 : i32
    return %arg0, %arg1, %arg2 : i32, i32, i32
  }
  func.func @transform_2(%arg0: i32, %arg1: i32, %arg2: i32) -> (i32, i32) {
    %c0_i32 = arith.constant 0 : i32
    return %arg1, %arg2 : i32, i32
  }
  func.func @transform_3(%arg0: i32, %arg1: i32, %arg2: i32) -> (i32, i32) {
    %c0_i32 = arith.constant 0 : i32
    return %arg1, %arg2 : i32, i32
  }
  func.func @transform_4(%arg0: i32, %arg1: i32, %arg2: i32) -> (i32, i32) {
    %c0_i32 = arith.constant 0 : i32
    return %arg0, %arg1 : i32, i32
  }
  func.func @transform_5(%arg0: i32, %arg1: i32, %arg2: i32) -> (i32, i32) {
    %c0_i32 = arith.constant 0 : i32
    %c0_i32_0 = arith.constant 0 : i32
    return %c0_i32, %arg1 : i32, i32
  }
  func.func @transform_6(%arg0: i32, %arg1: i32, %arg2: i32) -> (i32, i32) {
    %c0_i32 = arith.constant 0 : i32
    %c0_i32_0 = arith.constant 0 : i32
    return %c0_i32, %arg1 : i32, i32
  }
  func.func @transform_7(%arg0: i32, %arg1: i32, %arg2: i32) -> (i32, i32) {
    %c0_i32 = arith.constant 0 : i32
    return %arg0, %arg1 : i32, i32
  }
}

</mosaic_0001>

<llo_original>
// kernel: tpu_custom_call.1
$region0: #{tpu_custom_call.1}
  #allocation0 [shape = 'u32[]', space=smem, size = 0x4, offset = 0x4, fixed_abs, tag = 'smem constant byte address 0x4 - core index']
  #allocation1 [shape = 'u32[144,128]{1,0:T(1,128)}', space=vmem, size = 0x12000, scoped, tag = 'internal scratch']
  #allocation2 [shape = 'f32[2,32]{1,0:T(2,128)}', space=vmem, size = 0x400, scoped, tag = 'scratch operand']
  %s0 = inlined_call_operand.hbm [shape: f32[2,32], index: 0, kind: input, shape index: {}]
  %s1 = inlined_call_operand.hbm [shape: f32[2,32,32], index: 1, kind: input, shape index: {}]
  %s2 = inlined_call_operand.hbm [shape: f32[32,32], index: 2, kind: input, shape index: {}]
  %s3 = inlined_call_operand.hbm [shape: f32[32,32], index: 3, kind: input, shape index: {}]
  %s4 = inlined_call_operand.vmem [shape: f32[2,32], index: 4, kind: input, shape index: {}]
  %s5 = inlined_call_operand.vmem [shape: f32[1,32], index: 5, kind: input, shape index: {}]
  %s6 = inlined_call_operand.vmem [shape: f32[1,32], index: 6, kind: input, shape index: {}]
  %s7 = inlined_call_operand.hbm [shape: f32[2,32], index: 7, kind: output, shape index: {}]
  %s8 = sld [smem:[#allocation0]]
  $region62: #{tpu_custom_call.1} parent=0
    _
  %s10 = ssub.s32 1, %s8
  %s11 = scalar_select 0, %s10, %s8
  $region1: #{tpu_custom_call.1} parent=0
    #allocation3 [shape = 'u8[1024]{0}', space=vmem, size = 0x400, scoped, tag = 'input window, operand 0, single buffered']
    #allocation4 [shape = 's32[1]{0}', space=sflag, size = 0x4, scoped, tag = 'scoped memory for tpu_custom_call.1']
    #allocation5 [shape = 's32[1]{0}', space=sflag, size = 0x4, scoped, tag = 'scoped memory for tpu_custom_call.1']
    #allocation6 [shape = 'u8[32768]{0}', space=vmem, size = 0x8000, scoped, tag = 'input window, operand 1, single buffered']
    #allocation7 [shape = 's32[1]{0}', space=sflag, size = 0x4, scoped, tag = 'scoped memory for tpu_custom_call.1']
    #allocation8 [shape = 'u8[16384]{0}', space=vmem, size = 0x4000, scoped, tag = 'input window, operand 2, single buffered']
    #allocation9 [shape = 'u8[16384]{0}', space=vmem, size = 0x4000, scoped, tag = 'input window, operand 3, single buffered']
    #allocation10 [shape = 's32[1]{0}', space=sflag, size = 0x4, scoped, tag = 'scoped memory for tpu_custom_call.1']
    #allocation11 [shape = 'u8[1024]{0}', space=vmem, size = 0x400, scoped, tag = 'output window, operand 0, single buffered']
    %12 = vsyncpa [#allocation4], 0
    %13 = vsyncpa [#allocation7], 0
    %14 = vsyncpa [#allocation10], 0
    %15 = vsyncpa [#allocation5], 0
    // Predicated region
    $region2: #{tpu_custom_call.1} parent=1 // pred_check
      _
    $region3: #{tpu_custom_call.1} parent=1 // pred_check_branch
      %17 = sbr.rel (0) target = $region5
    $region4: #{tpu_custom_call.1} parent=1 // pred_region
      %s19 = ssub.s32 32, 32
      %20 = vsyncadd [#allocation4], %s19
      %s22 = sshll.u32 [#allocation3], 4
      %s23 = int_to_ptr.vmem [resolvable:$true] %s22
      %25 = dma.hbm_to_vmem [thread:$0]  %s0, 32, %s23, [#allocation4]
    $region5: #{tpu_custom_call.1} parent=1 // pred_fallthru
      _
    // Predicated region
    $region6: #{tpu_custom_call.1} parent=1 // pred_check
      _
    $region7: #{tpu_custom_call.1} parent=1 // pred_check_branch
      %27 = sbr.rel (0) target = $region9
    $region8: #{tpu_custom_call.1} parent=1 // pred_region
      %s29 = ssub.s32 1024, 1024
      %30 = vsyncadd [#allocation7], %s29
      %s31 = sshll.u32 [#allocation6], 4
      %s32 = int_to_ptr.vmem [resolvable:$true] %s31
      %37 = dma.hbm_to_vmem [thread:$0]  %s1, 1024, %s32, [#allocation7], 128, 128, 8
    $region9: #{tpu_custom_call.1} parent=1 // pred_fallthru
      _
    // Predicated region
    $region10: #{tpu_custom_call.1} parent=1 // pred_check
      _
    $region11: #{tpu_custom_call.1} parent=1 // pred_check_branch
      %39 = sbr.rel (0) target = $region13
    $region12: #{tpu_custom_call.1} parent=1 // pred_region
      %s41 = ssub.s32 512, 512
      %42 = vsyncadd [#allocation7], %s41
      %s43 = sshll.u32 [#allocation8], 4
      %s44 = int_to_ptr.vmem [resolvable:$true] %s43
      %49 = dma.hbm_to_vmem [thread:$0]  %s2, 512, %s44, [#allocation7], 128, 128, 8
    $region13: #{tpu_custom_call.1} parent=1 // pred_fallthru
      _
    // Predicated region
    $region14: #{tpu_custom_call.1} parent=1 // pred_check
      _
    $region15: #{tpu_custom_call.1} parent=1 // pred_check_branch
      %51 = sbr.rel (0) target = $region17
    $region16: #{tpu_custom_call.1} parent=1 // pred_region
      %s53 = ssub.s32 512, 512
      %54 = vsyncadd [#allocation10], %s53
      %s55 = sshll.u32 [#allocation9], 4
      %s56 = int_to_ptr.vmem [resolvable:$true] %s55
      %61 = dma.hbm_to_vmem [thread:$0]  %s3, 512, %s56, [#allocation10], 128, 128, 8
    $region17: #{tpu_custom_call.1} parent=1 // pred_fallthru
      _
    // Predicated region
    $region18: #{tpu_custom_call.1} parent=1 // pred_check
      _
    $region19: #{tpu_custom_call.1} parent=1 // pred_check_branch
      %63 = sbr.rel (0) target = $region21
    $region20: #{tpu_custom_call.1} parent=1 // pred_region
      _
    $region21: #{tpu_custom_call.1} parent=1 // pred_fallthru
      _
    // Predicated region
    $region22: #{tpu_custom_call.1} parent=1 // pred_check
      _
    $region23: #{tpu_custom_call.1} parent=1 // pred_check_branch
      %65 = sbr.rel (0) target = $region25
    $region24: #{tpu_custom_call.1} parent=1 // pred_region
      _
    $region25: #{tpu_custom_call.1} parent=1 // pred_fallthru
      _
    // Predicated region
    $region26: #{tpu_custom_call.1} parent=1 // pred_check
      _
    $region27: #{tpu_custom_call.1} parent=1 // pred_check_branch
      %67 = sbr.rel (0) target = $region29
    $region28: #{tpu_custom_call.1} parent=1 // pred_region
      _
    $region29: #{tpu_custom_call.1} parent=1 // pred_fallthru
      _
    // Predicated region
    $region30: #{tpu_custom_call.1} parent=1 // pred_check
      _
    $region31: #{tpu_custom_call.1} parent=1 // pred_check_branch
      %69 = sbr.rel (0) target = $region33
    $region32: #{tpu_custom_call.1} parent=1 // pred_region
      %70 = dma.done [#allocation4], 32
    $region33: #{tpu_custom_call.1} parent=1 // pred_fallthru
      _
    // Predicated region
    $region34: #{tpu_custom_call.1} parent=1 // pred_check
      _
    $region35: #{tpu_custom_call.1} parent=1 // pred_check_branch
      %72 = sbr.rel (0) target = $region37
    $region36: #{tpu_custom_call.1} parent=1 // pred_region
      %73 = dma.done [#allocation7], 1024
    $region37: #{tpu_custom_call.1} parent=1 // pred_fallthru
      _
    // Predicated region
    $region38: #{tpu_custom_call.1} parent=1 // pred_check
      _
    $region39: #{tpu_custom_call.1} parent=1 // pred_check_branch
      %75 = sbr.rel (0) target = $region41
    $region40: #{tpu_custom_call.1} parent=1 // pred_region
      %76 = dma.done [#allocation7], 512
    $region41: #{tpu_custom_call.1} parent=1 // pred_fallthru
      _
    // Predicated region
    $region42: #{tpu_custom_call.1} parent=1 // pred_check
      _
    $region43: #{tpu_custom_call.1} parent=1 // pred_check_branch
      %78 = sbr.rel (0) target = $region45
    $region44: #{tpu_custom_call.1} parent=1 // pred_region
      %79 = dma.done [#allocation10], 512
    $region45: #{tpu_custom_call.1} parent=1 // pred_fallthru
      _
    %p80 = scmp.eq.s32.totalorder 0, 0
    // Predicated region
    $region46: #{tpu_custom_call.1} parent=1 // pred_check
      %p81 = pneg %p80
    $region47: #{tpu_custom_call.1} parent=1 // pred_check_branch
      %83 = sbr.rel (%p81) target = $region49
    $region48: #{tpu_custom_call.1} parent=1 // pred_region
      %vm84 = vcmask 254976
      %85 = vst.msk [vmem:[#allocation2] sm:$0x3] %vm84, 0.0
    $region49: #{tpu_custom_call.1} parent=1 // pred_fallthru
      _
    %v86 = vld [vmem:[#allocation3] sm:$0x3]
    %v87 = vld [vmem:[#allocation9] sm:$0xff]
    %v88 = vld [vmem:[#allocation9 + $0x8] sm:$0xff]
    %v89 = vld [vmem:[#allocation9 + $0x10] sm:$0xff]
    %v90 = vld [vmem:[#allocation9 + $0x18] sm:$0xff]
    %v91 = vld [vmem:[#allocation6] sm:$0xff]
    %v92 = vld [vmem:[#allocation6 + $0x8] sm:$0xff]
    %v93 = vld [vmem:[#allocation6 + $0x10] sm:$0xff]
    %v94 = vld [vmem:[#allocation6 + $0x18] sm:$0xff]
    %v95 = vld [vmem:[#allocation6 + $0x20] sm:$0xff]
    %v96 = vld [vmem:[#allocation6 + $0x28] sm:$0xff]
    %v97 = vld [vmem:[#allocation6 + $0x30] sm:$0xff]
    %v98 = vld [vmem:[#allocation6 + $0x38] sm:$0xff]
    %v99 = vld [vmem:[#allocation8] sm:$0xff]
    %v100 = vld [vmem:[#allocation8 + $0x8] sm:$0xff]
    %v101 = vld [vmem:[#allocation8 + $0x10] sm:$0xff]
    %v102 = vld [vmem:[#allocation8 + $0x18] sm:$0xff]
    %v103 = vmul.f32 %v91, %v99
    %v104 = vmul.f32 %v92, %v100
    %v105 = vmul.f32 %v93, %v101
    %v106 = vmul.f32 %v94, %v102
    %v107 = vmul.f32 %v95, %v99
    %v108 = vmul.f32 %v96, %v100
    %v109 = vmul.f32 %v97, %v101
    %v110 = vmul.f32 %v98, %v102
    %v113 = vunpack.c.l.s4 1966171168
    %v114 = vunpack.c.0.s8 %v113
    %v115 = vlaneseq
    %v116 = vshrl.u32 %v115, 7
    %v117 = vsub.s32 %v114, %v116
    %v118 = vrot.slane %v86, %v117
    %v119 = vcombine.high %v118, %v118
    %v121 = vunpack.c.l.s4 1966171168
    %v122 = vunpack.c.0.s8 %v121
    %v123 = vlaneseq
    %v124 = vshrl.u32 %v123, 7
    %v125 = vsub.s32 %v122, %v124
    %v126 = vrot.slane %v118, %v125
    %v128 = vunpack.c.l.s4 1966171168
    %v129 = vunpack.c.0.s8 %v128
    %v130 = vlaneseq
    %v131 = vshrl.u32 %v130, 7
    %v132 = vsub.s32 %v129, %v131
    %v133 = vrot.slane %v119, %v132
    %v134 = vlaneseq
    %v135 = vshrl.u32 %v134, 7
    %v136 = vsub.s32 0, %v135
    %v137 = vrot.slane %v126, %v136
    %v138 = vlaneseq
    %v139 = vshrl.u32 %v138, 7
    %v140 = vsub.s32 0, %v139
    %v141 = vrot.slane %v133, %v140
    %v144 = vmul.f32 %v103, %v137
    %v145 = vmul.f32 %v104, %v137
    %v146 = vmul.f32 %v105, %v137
    %v147 = vmul.f32 %v106, %v137
    %v148 = vmul.f32 %v107, %v141
    %v149 = vmul.f32 %v108, %v141
    %v150 = vmul.f32 %v109, %v141
    %v151 = vmul.f32 %v110, %v141
    %vm152 = vcmask 261120
    %v153 = vsel %vm152, %v144, 0.0
    %154 = vadd.xlane.f32.xlu0 %v153
    %v155 = vpop.xlane.xlu0 %154
    %v156 = vsel %vm152, %v145, 0.0
    %157 = vadd.xlane.f32.xlu0 %v156
    %v158 = vpop.xlane.xlu0 %157
    %v159 = vsel %vm152, %v146, 0.0
    %160 = vadd.xlane.f32.xlu0 %v159
    %v161 = vpop.xlane.xlu0 %160
    %v162 = vsel %vm152, %v147, 0.0
    %163 = vadd.xlane.f32.xlu0 %v162
    %v164 = vpop.xlane.xlu0 %163
    %v165 = vsel %vm152, %v148, 0.0
    %166 = vadd.xlane.f32.xlu0 %v165
    %v167 = vpop.xlane.xlu0 %166
    %v168 = vsel %vm152, %v149, 0.0
    %169 = vadd.xlane.f32.xlu0 %v168
    %v170 = vpop.xlane.xlu0 %169
    %v171 = vsel %vm152, %v150, 0.0
    %172 = vadd.xlane.f32.xlu0 %v171
    %v173 = vpop.xlane.xlu0 %172
    %v174 = vsel %vm152, %v151, 0.0
    %175 = vadd.xlane.f32.xlu0 %v174
    %v176 = vpop.xlane.xlu0 %175
    %v177 = vld [vmem:[#allocation2] sm:$0x3]
    %v186 = vlaneseq
    %v187 = vand.u32 %v186, 127
    %v188 = vlaneseq
    %v189 = vshrl.u32 %v188, 7
    %v190 = vsub.s32 %v187, %v189
    %v191 = vrot.slane %v155, %v190
    %v192 = vadd.s32 %v187, 4294967288
    %v193 = vlaneseq
    %v194 = vshrl.u32 %v193, 7
    %v195 = vsub.s32 %v192, %v194
    %v196 = vrot.slane %v158, %v195
    %vm197 = vcmask 130112
    %v198 = vsel %vm197, %v196, %v191
    %v199 = vadd.s32 %v187, 4294967280
    %v200 = vlaneseq
    %v201 = vshrl.u32 %v200, 7
    %v202 = vsub.s32 %v199, %v201
    %v203 = vrot.slane %v161, %v202
    %vm204 = vcmask 195712
    %v205 = vsel %vm204, %v203, %v198
    %v206 = vadd.s32 %v187, 4294967272
    %v207 = vlaneseq
    %v208 = vshrl.u32 %v207, 7
    %v209 = vsub.s32 %v206, %v208
    %v210 = vrot.slane %v164, %v209
    %vm211 = vcmask 261312
    %v212 = vsel %vm211, %v210, %v205
    %v213 = vlaneseq
    %v214 = vshrl.u32 %v213, 7
    %v215 = vsub.s32 %v187, %v214
    %v216 = vrot.slane %v167, %v215
    %v217 = vlaneseq
    %v218 = vshrl.u32 %v217, 7
    %v219 = vsub.s32 %v192, %v218
    %v220 = vrot.slane %v170, %v219
    %v221 = vsel %vm197, %v220, %v216
    %v222 = vlaneseq
    %v223 = vshrl.u32 %v222, 7
    %v224 = vsub.s32 %v199, %v223
    %v225 = vrot.slane %v173, %v224
    %v226 = vsel %vm204, %v225, %v221
    %v227 = vlaneseq
    %v228 = vshrl.u32 %v227, 7
    %v229 = vsub.s32 %v206, %v228
    %v230 = vrot.slane %v176, %v229
    %v231 = vsel %vm211, %v230, %v226
    %vm232 = vcmask 1041409
    %v233 = vsel %vm232, %v231, %v212
    %v235 = vsel %vm152, %v86, 0
    %v238 = vsel %vm152, %v87, 0
    %v241 = vsel %vm152, %v88, 0
    %v244 = vsel %vm152, %v89, 0
    %v247 = vsel %vm152, %v90, 0
    %249 = vmatprep.subr.mxu0 0.0
    %250 = vmatpush1.xpose.msra.mxu0 %v238
    %251 = vmatprep.subr.mxu0 0.0
    %252 = vmatpush1.xpose.msra.mxu0 %v241
    %253 = vmatprep.subr.mxu0 0.0
    %254 = vmatpush1.xpose.msra.mxu0 %v244
    %255 = vmatprep.subr.mxu0 0.0
    %256 = vmatpush1.xpose.msra.mxu0 %v247
    %257 = vmatprep.subr.mxu0 0.0
    %258 = vmatpush1.xpose.msra.mxu0 0.0
    %259 = vmatprep.subr.mxu0 0.0
    %260 = vmatpush1.xpose.msra.mxu0 0.0
    %261 = vmatprep.subr.mxu0 0.0
    %262 = vmatpush1.xpose.msra.mxu0 0.0
    %263 = vmatprep.subr.mxu0 0.0
    %264 = vmatpush1.xpose.msra.mxu0 0.0
    %265 = vmatprep.subr.mxu0 0.0
    %266 = vmatpush1.xpose.msra.mxu0 0.0
    %267 = vmatprep.subr.mxu0 0.0
    %268 = vmatpush1.xpose.msra.mxu0 0.0
    %269 = vmatprep.subr.mxu0 0.0
    %270 = vmatpush1.xpose.msra.mxu0 0.0
    %271 = vmatprep.subr.mxu0 0.0
    %272 = vmatpush1.xpose.msra.mxu0 0.0
    %273 = vmatprep.subr.mxu0 0.0
    %274 = vmatpush1.xpose.msra.mxu0 0.0
    %275 = vmatprep.subr.mxu0 0.0
    %276 = vmatpush1.xpose.msra.mxu0 0.0
    %277 = vmatprep.subr.mxu0 0.0
    %278 = vmatpush1.xpose.msra.mxu0 0.0
    %279 = vmatprep.subr.mxu0 0.0
    %280 = vmatpush1.xpose.msra.mxu0 0.0
    %281 = vmatprep.subr.mxu0 0.0
    %282 = vmatpush1.xpose.msra.mxu0 0.0
    %283 = vmatprep.subr.mxu0 0.0
    %284 = vmatpush1.xpose.msra.mxu0 0.0
    %285 = vmatprep.subr.mxu0 0.0
    %286 = vmatpush1.xpose.msra.mxu0 0.0
    %287 = vmatprep.subr.mxu0 0.0
    %288 = vmatpush1.xpose.msra.mxu0 0.0
    %289 = vmatprep.subr.mxu0 0.0
    %290 = vmatpush1.xpose.msra.mxu0 0.0
    %291 = vmatprep.subr.mxu0 0.0
    %292 = vmatpush1.xpose.msra.mxu0 0.0
    %293 = vmatprep.subr.mxu0 0.0
    %294 = vmatpush1.xpose.msra.mxu0 0.0
    %295 = vmatprep.subr.mxu0 0.0
    %296 = vmatpush1.xpose.msra.mxu0 0.0
    %297 = vmatprep.subr.mxu0 0.0
    %298 = vmatpush1.xpose.msra.mxu0 0.0
    %299 = vmatprep.subr.mxu0 0.0
    %300 = vmatpush1.xpose.msra.mxu0 0.0
    %301 = vmatprep.subr.mxu0 0.0
    %302 = vmatpush1.xpose.msra.mxu0 0.0
    %303 = vmatprep.subr.mxu0 0.0
    %304 = vmatpush1.xpose.msra.mxu0 0.0
    %305 = vmatprep.subr.mxu0 0.0
    %306 = vmatpush1.xpose.msra.mxu0 0.0
    %307 = vmatprep.subr.mxu0 0.0
    %308 = vmatpush1.xpose.msra.mxu0 0.0
    %309 = vmatprep.subr.mxu0 0.0
    %310 = vmatpush1.xpose.msra.mxu0 0.0
    %311 = vmatprep.subr.mxu0 0.0
    %312 = vmatpush1.xpose.msra.mxu0 0.0
    %313 = vmatprep.mubr.f32.mxu0 0.0
    %314 = vmatmul.mubr.f32.gmra.mrb[0].mxu0 %v235
    %v315 = vpop.f32.mrb[0].mxu0
    %v316 = vadd.f32 %v233, %v315
    %v317 = vpop.f32.mrb[0].mxu0
    %318 = vdwg.mxu0
    %v319 = vadd.f32 %v177, %v316
    %vm320 = vcmask 254976
    %321 = vst.msk [vmem:[#allocation2] sm:$0x3] %vm320, %v319
    // Predicated region
    $region50: #{tpu_custom_call.1} parent=1 // pred_check
      %p322 = pneg %p80
    $region51: #{tpu_custom_call.1} parent=1 // pred_check_branch
      %324 = sbr.rel (%p322) target = $region53
    $region52: #{tpu_custom_call.1} parent=1 // pred_region
      %v325 = vld [vmem:[%s4] sm:$0x3]
      %v326 = vld [vmem:[%s5] sm:$0x1]
      %v328 = vlaneseq
      %v329 = vshrl.u32 %v328, 7
      %v330 = vsub.s32 0, %v329
      %v331 = vrot.slane %v326, %v330
      %v333 = vmul.f32 %v325, %v331
      %v334 = vld [vmem:[%s6] sm:$0x1]
      %v336 = vlaneseq
      %v337 = vshrl.u32 %v336, 7
      %v338 = vsub.s32 0, %v337
      %v339 = vrot.slane %v334, %v338
      %v341 = vadd.f32 %v333, %v339
      %v342 = vld [vmem:[#allocation2] sm:$0x3]
      %v343 = vadd.f32 %v342, %v341
      %344 = vst.msk [vmem:[#allocation11] sm:$0x3] %vm320, %v343
    $region53: #{tpu_custom_call.1} parent=1 // pred_fallthru
      _
    // Predicated region
    $region54: #{tpu_custom_call.1} parent=1 // pred_check
      _
    $region55: #{tpu_custom_call.1} parent=1 // pred_check_branch
      %346 = sbr.rel (0) target = $region57
    $region56: #{tpu_custom_call.1} parent=1 // pred_region
      %s348 = ssub.s32 32, 32
      %349 = vsyncadd [#allocation5], %s348
      %s351 = sshll.u32 [#allocation11], 4
      %s352 = int_to_ptr.vmem [resolvable:$true] %s351
      %354 = dma.vmem_to_hbm [thread:$0]  %s352, 32, %s7, [#allocation5]
    $region57: #{tpu_custom_call.1} parent=1 // pred_fallthru
      _
    // Predicated region
    $region58: #{tpu_custom_call.1} parent=1 // pred_check
      _
    $region59: #{tpu_custom_call.1} parent=1 // pred_check_branch
      %356 = sbr.rel (0) target = $region61
    $region60: #{tpu_custom_call.1} parent=1 // pred_region
      %357 = dma.done [#allocation5], 32
    $region61: #{tpu_custom_call.1} parent=1 // pred_fallthru
      _
    %358 = vsyncpa [#allocation4], 1
    %359 = vsyncpa [#allocation7], 1
    %360 = vsyncpa [#allocation10], 1
    %361 = vsyncpa [#allocation5], 1

</llo_original>
